<compile_context>
chip_gen: v5e
topology: v5e:2x2
jax: 0.10.0
libtpu: 0.0.40
codegen_flags: <defaults>
</compile_context>

<pallas_src>
import jax
import jax.numpy as jnp
from jax.experimental import pallas as pl
from jax.experimental.pallas import tpu as pltpu

_LANE = 128
_SUBLANE = 8


def _round_up(n: int, m: int) -> int:
    return ((n + m - 1) // m) * m


def _vmem_budget_bytes() -> int:
    """~85% of per-TensorCore VMEM (generation aware: v5e/v6e 128 MiB, v7x 64 MiB)."""
    cap = 64 * 1024 * 1024  # conservative fallback (v7x per-core)
    try:
        info = pltpu.get_tpu_info()
        cap = int(getattr(info, "vmem_capacity_bytes", cap) or cap)
    except Exception:
        pass
    return int(cap * 0.85)


def _megacore_adjust(tm: int, n: int) -> int:
    """Keep >= 2 tiles on the 'parallel' rows axis when N allows, so v7x's two
    TensorCores both get work (shrinking tm only ever reduces VMEM use)."""
    n8 = _round_up(max(n, 1), _SUBLANE)
    while tm > _SUBLANE and _round_up(n, tm) // tm < 2 and n8 >= 2 * _SUBLANE:
        tm = max(_SUBLANE, _round_up(tm // 2, _SUBLANE))
    return tm


def _choose_fast_tm(n, h, v_pad, out_bytes, budget):
    """Largest row tile for which the resident bf16 weight + double-buffered x/out
    tiles + the (single) f32 logits temporary fit in `budget`; None if nothing fits."""
    n8 = _round_up(max(n, 1), _SUBLANE)
    resident = h * v_pad * 2 + v_pad * 4          # bf16 weight + f32 bias
    cap = int(budget * 0.9)                       # leave headroom inside the limit
    for cand in (512, 256, 128, 64, 32, 16, 8):
        tm_eff = _round_up(min(cand, n8), _SUBLANE)
        need = (resident
                + 2 * tm_eff * h * 2              # double-buffered bf16 x tiles
                + 2 * tm_eff * v_pad * out_bytes  # double-buffered out tiles
                + tm_eff * v_pad * 4)             # f32 logits value (counted once)
        if need <= cap:
            return tm_eff
    return None


def _tiled_vmem_need(tm, tv, h, out_bytes):
    return (2 * tm * h * 2            # x tiles (bf16)
            + 2 * tv * h * 2          # weight tiles (bf16)
            + 2 * tv * 4              # bias tiles
            + 2 * tm * tv * out_bytes # out tiles
            + tm * tv * 4             # f32 logits value
            + 2 * tm * 4)             # running max / running sum scratch


def _choose_tiled_tiles(n, h, v_pad, out_bytes, budget,
                        tm_override=None, tv_override=None):
    """Pick (tm, tv) for the vocab-tiled path.  Big tm first (weight HBM traffic
    scales with the number of row tiles), then the widest vocab tile that fits."""
    n8 = _round_up(max(n, 1), _SUBLANE)
    cap = int(budget * 0.9)

    if tv_override is not None:
        tv_c = max(_LANE, min(_round_up(int(tv_override), _LANE), v_pad))
        while v_pad % tv_c:
            tv_c -= _LANE
        tv_cands = [tv_c]
    else:
        tv_cap = min(v_pad, 4096)
        tv_cands = [t for t in range(tv_cap, _LANE - 1, -_LANE) if v_pad % t == 0]
        if not tv_cands:
            tv_cands = [v_pad]

    if tm_override is not None:
        tm_cands = [_round_up(min(int(tm_override), n8), _SUBLANE)]
    else:
        tm_cands = [t for t in (1024, 512, 256, 128, 64, 32, 16, 8) if t <= n8]
        if not tm_cands:
            tm_cands = [_SUBLANE]

    choices = []
    for tm in tm_cands:                    # descending: prefer big row tiles
        for tv in tv_cands:                # descending: widest fitting vocab tile
            if _tiled_vmem_need(tm, tv, h, out_bytes) <= cap:
                choices.append((tm, tv))
                break
    if not choices:
        return tm_cands[-1], tv_cands[-1]
    wide = [c for c in choices if c[1] >= min(512, tv_cands[0])]
    return wide[0] if wide else choices[0]


# ---------------------------------------------------------------------------
# Fast path: whole (H, Vp) bf16 weight resident, one pass, plain log-softmax.
# ---------------------------------------------------------------------------
def _mlm_kernel_resident(x_ref, w_ref, b_ref, o_ref):
    # x: (TM, H) bf16, w: (H, Vp) bf16, b: (1, Vp) f32, o: (TM, Vp)
    logits = jnp.dot(x_ref[...], w_ref[...],
                     preferred_element_type=jnp.float32) + b_ref[...]
    m = jnp.max(logits, axis=-1, keepdims=True)                        # XLU
    shifted = logits - m                                               # VPU
    lse = jnp.log(jnp.sum(jnp.exp(shifted), axis=-1, keepdims=True))   # EUP+XLU
    o_ref[...] = (shifted - lse).astype(o_ref.dtype)


# ---------------------------------------------------------------------------
# Tiled path: vocab tiled, two passes over V per row tile.
#   pass p=0: accumulate running max / running sum (online logsumexp); NO output
#             store -- every p=0 step maps to output block (i, 0), which is held
#             resident and fully overwritten at (p=1, v=0) before any writeback.
#   pass p=1: recompute the logits tile and write logits - lse.
# ---------------------------------------------------------------------------
def _mlm_kernel_tiled(x_ref, w_ref, b_ref, o_ref, m_ref, l_ref):
    p = pl.program_id(1)   # 0 = accumulate logsumexp, 1 = write output
    v = pl.program_id(2)

    logits = jnp.dot(x_ref[...], w_ref[...],
                     preferred_element_type=jnp.float32) + b_ref[...]

    @pl.when(p == 0)
    def _():
        @pl.when(v == 0)
        def _():
            m_ref[...] = jnp.full_like(m_ref, -jnp.inf)
            l_ref[...] = jnp.zeros_like(l_ref)
        m_prev = m_ref[...]
        m_new = jnp.maximum(m_prev, jnp.max(logits, axis=-1, keepdims=True))
        l_ref[...] = (l_ref[...] * jnp.exp(m_prev - m_new)
                      + jnp.sum(jnp.exp(logits - m_new), axis=-1, keepdims=True))
        m_ref[...] = m_new

    @pl.when(p == 1)
    def _():
        lse = m_ref[...] + jnp.log(l_ref[...])
        o_ref[...] = (logits - lse).astype(o_ref.dtype)


# ---------------------------------------------------------------------------
# Parameter prep (hoisted out of the per-forward path -- do this once at init).
# ---------------------------------------------------------------------------
def prepare_mlm_params(weight, bias):
    """weight: [V, H] (nn.Linear), bias: [V] -> (w_t bf16 [H, Vp], bias f32 [1, Vp], V).

    Pads V up to a multiple of 128; padded bias columns get -1e30 so their exp()
    underflows to exactly 0 and the log-softmax over the real vocab is unchanged.
    """
    V, H = weight.shape
    v_pad = _round_up(V, _LANE)
    w_t = weight.astype(jnp.bfloat16).T           # (H, V)
    b = bias.astype(jnp.float32)
    if v_pad != V:
        w_t = jnp.pad(w_t, ((0, 0), (0, v_pad - V)))
        b = jnp.pad(b, (0, v_pad - V), constant_values=-1e30)
    return w_t, b.reshape(1, v_pad), V


# ---------------------------------------------------------------------------
# Forward: log_softmax(x @ W.T + b, dim=-1) for x: [B, S, H].
# ---------------------------------------------------------------------------
def masked_language_model(x, w_t, b2d, vocab_size, *, out_dtype=jnp.float32,
                          force_path=None, tm=None, tv=None):
    """w_t/b2d come from prepare_mlm_params.  out_dtype=jnp.bfloat16 halves the
    dominant [N, V] output HBM writeback if downstream tolerates it."""
    B, S, H = x.shape
    Hw, v_pad = w_t.shape
    assert Hw == H and b2d.shape == (1, v_pad)
    V = int(vocab_size)
    N = B * S
    out_bytes = jnp.dtype(out_dtype).itemsize
    budget = _vmem_budget_bytes()

    x2d = x.reshape(N, H).astype(jnp.bfloat16)

    tm_fast = tm if tm is not None else _choose_fast_tm(N, H, v_pad, out_bytes, budget)
    if force_path == "resident":
        use_resident, tm_fast = True, (tm_fast or _SUBLANE)
    elif force_path == "tiled":
        use_resident = False
    else:
        use_resident = tm_fast is not None

    if use_resident:
        tm_r = _megacore_adjust(int(tm_fast), N)
        n_pad = _round_up(N, tm_r)
        nm = n_pad // tm_r
        if n_pad != N:
            x2d = jnp.pad(x2d, ((0, n_pad - N), (0, 0)))
        out = pl.pallas_call(
            _mlm_kernel_resident,
            out_shape=jax.ShapeDtypeStruct((n_pad, v_pad), out_dtype),
            grid_spec=pltpu.PrefetchScalarGridSpec(
                num_scalar_prefetch=0,
                grid=(nm,),
                in_specs=[
                    pl.BlockSpec((tm_r, H), lambda i: (i, 0)),   # row tile of x
                    pl.BlockSpec((H, v_pad), lambda i: (0, 0)),  # resident weight
                    pl.BlockSpec((1, v_pad), lambda i: (0, 0)),  # bias
                ],
                out_specs=pl.BlockSpec((tm_r, v_pad), lambda i: (i, 0)),
            ),
            compiler_params=pltpu.CompilerParams(
                dimension_semantics=("parallel",),
                vmem_limit_bytes=budget,
            ),
            cost_estimate=pl.CostEstimate(
                flops=2 * n_pad * H * v_pad,
                transcendentals=n_pad * v_pad,
                bytes_accessed=(n_pad * H * 2 + H * v_pad * 2 + v_pad * 4
                                + n_pad * v_pad * out_bytes),
            ),
        )(x2d, w_t, b2d)
    else:
        tm_t, tv_t = _choose_tiled_tiles(N, H, v_pad, out_bytes, budget,
                                         tm_override=tm, tv_override=tv)
        tm_t = _megacore_adjust(tm_t, N)
        n_pad = _round_up(N, tm_t)
        nm = n_pad // tm_t
        nv = v_pad // tv_t
        if n_pad != N:
            x2d = jnp.pad(x2d, ((0, n_pad - N), (0, 0)))
        out = pl.pallas_call(
            _mlm_kernel_tiled,
            out_shape=jax.ShapeDtypeStruct((n_pad, v_pad), out_dtype),
            grid_spec=pltpu.PrefetchScalarGridSpec(
                num_scalar_prefetch=0,
                grid=(nm, 2, nv),
                in_specs=[
                    pl.BlockSpec((tm_t, H), lambda i, p, v: (i, 0)),
                    pl.BlockSpec((H, tv_t), lambda i, p, v: (0, v)),
                    pl.BlockSpec((1, tv_t), lambda i, p, v: (0, v)),
                ],
                # Pass 0 (p==0) always maps to block (i, 0): it stays resident in
                # VMEM (no writeback, no store) until (p=1, v=0) fully overwrites
                # it, so the [N, V] output is written to HBM exactly once.
                out_specs=pl.BlockSpec((tm_t, tv_t), lambda i, p, v: (i, v * p)),
                scratch_shapes=[
                    pltpu.VMEM((tm_t, 1), jnp.float32),   # running max
                    pltpu.VMEM((tm_t, 1), jnp.float32),   # running sum
                ],
            ),
            compiler_params=pltpu.CompilerParams(
                dimension_semantics=("parallel", "arbitrary", "arbitrary"),
                vmem_limit_bytes=budget,
            ),
            cost_estimate=pl.CostEstimate(
                flops=2 * 2 * n_pad * H * v_pad,
                transcendentals=2 * n_pad * v_pad,
                bytes_accessed=(n_pad * H * 2
                                + 2 * nm * (H * v_pad * 2 + v_pad * 4)
                                + n_pad * v_pad * out_bytes),
            ),
        )(x2d, w_t, b2d)

    return out[:N, :V].reshape(B, S, V)


if __name__ == "__main__":
    # Small shapes consistent with the module: hidden=32, vocab=256, batch=2, seq=8.
    B, S, H, V = 2, 8, 32, 256
    key = jax.random.PRNGKey(0)
    kx, kw, kb = jax.random.split(key, 3)

    x = jax.random.normal(kx, (B, S, H), dtype=jnp.float32)
    weight = jax.random.normal(kw, (V, H), dtype=jnp.float32) * 0.02  # nn.Linear weight [V, H]
    bias = jax.random.normal(kb, (V,), dtype=jnp.float32) * 0.02      # nn.Linear bias [V]

    ref = jax.nn.log_softmax(x @ weight.T + bias, axis=-1)

    # One-time parameter prep (hoisted out of the forward pass).
    w_t, b2d, vocab = prepare_mlm_params(weight, bias)

    # Auto path (weight-resident single pass at these shapes).
    out_fast = jax.block_until_ready(masked_language_model(x, w_t, b2d, vocab))
    assert out_fast.shape == (B, S, V)
    assert jnp.allclose(out_fast, ref, atol=2e-2, rtol=0), "fast path mismatch"
    assert jnp.allclose(jnp.sum(jnp.exp(out_fast), axis=-1), 1.0, atol=1e-3)

    # Force the vocab-tiled online-logsumexp path (two 128-wide vocab tiles,
    # two row tiles -> exercises the single-writeback revisit pattern).
    out_tiled = jax.block_until_ready(
        masked_language_model(x, w_t, b2d, vocab, force_path="tiled", tv=128))
    assert out_tiled.shape == (B, S, V)
    assert jnp.allclose(out_tiled, ref, atol=2e-2, rtol=0), "tiled path mismatch"
    assert jnp.allclose(jnp.sum(jnp.exp(out_tiled), axis=-1), 1.0, atol=1e-3)

    # Non-multiple-of-128 vocab: V is padded with bias=-1e30 (exact softmax).
    V2 = 200
    w2, b2 = weight[:V2], bias[:V2]
    ref2 = jax.nn.log_softmax(x @ w2.T + b2, axis=-1)
    w2_t, b2_2d, vocab2 = prepare_mlm_params(w2, b2)

    out2 = jax.block_until_ready(masked_language_model(x, w2_t, b2_2d, vocab2))
    assert out2.shape == (B, S, V2)
    assert jnp.allclose(out2, ref2, atol=2e-2, rtol=0), "padded-V fast path mismatch"
    assert jnp.allclose(jnp.sum(jnp.exp(out2), axis=-1), 1.0, atol=1e-3)

    out2_t = jax.block_until_ready(
        masked_language_model(x, w2_t, b2_2d, vocab2, force_path="tiled", tv=128))
    assert out2_t.shape == (B, S, V2)
    assert jnp.allclose(out2_t, ref2, atol=2e-2, rtol=0), "padded-V tiled path mismatch"
    assert jnp.allclose(jnp.sum(jnp.exp(out2_t), axis=-1), 1.0, atol=1e-3)

    print("KERNEL_OK")
</pallas_src>

<mosaic_0001>
module attributes {stable_mosaic.version = 11 : i64} {
  func.func @_mlm_kernel_resident(%arg0: i32, %arg1: memref<8x32xbf16, #tpu.memory_space<vmem>>, %arg2: memref<32x256xbf16, #tpu.memory_space<vmem>>, %arg3: memref<1x256xf32, #tpu.memory_space<vmem>>, %arg4: memref<8x256xf32, #tpu.memory_space<vmem>>) attributes {dimension_semantics = [#tpu.dimension_semantics<parallel>], iteration_bounds = array<i64: 2>, scalar_prefetch = 0 : i64, scratch_operands = 0 : i64, tpu.core_type = #tpu.core_type<tc>, window_params = [{transform_indices = @transform_0, window_bounds = array<i64: 8, 32>}, {pipeline_mode = #tpu.pipeline_mode<synchronous>, transform_indices = @transform_1, window_bounds = array<i64: 32, 256>}, {pipeline_mode = #tpu.pipeline_mode<synchronous>, transform_indices = @transform_2, window_bounds = array<i64: 1, 256>}, {transform_indices = @transform_3, window_bounds = array<i64: 8, 256>}]} {
    %c0 = arith.constant 0 : index
    %c0_0 = arith.constant 0 : index
    %0 = vector.load %arg1[%c0, %c0_0] : memref<8x32xbf16, #tpu.memory_space<vmem>>, vector<8x32xbf16>
    %c0_1 = arith.constant 0 : index
    %c0_2 = arith.constant 0 : index
    %1 = vector.load %arg2[%c0_1, %c0_2] : memref<32x256xbf16, #tpu.memory_space<vmem>>, vector<32x256xbf16>
    %cst = arith.constant dense<0.000000e+00> : vector<8x256xf32>
    %2 = tpu.matmul %0, %1, %cst {dimension_numbers = #tpu.dot_dimension_numbers<[1], [0], [0], [1], [0, 0, 1, 1], [], []>} : vector<8x32xbf16>, vector<32x256xbf16>, vector<8x256xf32> -> vector<8x256xf32>
    %c0_3 = arith.constant 0 : index
    %c0_4 = arith.constant 0 : index
    %3 = vector.load %arg3[%c0_3, %c0_4] : memref<1x256xf32, #tpu.memory_space<vmem>>, vector<1x256xf32>
    %4 = vector.broadcast %3 : vector<1x256xf32> to vector<8x256xf32>
    %5 = arith.addf %2, %4 : vector<8x256xf32>
    %cst_5 = arith.constant dense<0xFF800000> : vector<8xf32>
    %6 = vector.multi_reduction <maximumf>, %5, %cst_5 [1] : vector<8x256xf32> to vector<8xf32>
    %7 = vector.shape_cast %6 : vector<8xf32> to vector<8x1xf32>
    %8 = vector.broadcast %7 : vector<8x1xf32> to vector<8x256xf32>
    %9 = arith.subf %5, %8 : vector<8x256xf32>
    %10 = math.exp %9 : vector<8x256xf32>
    %cst_6 = arith.constant dense<0.000000e+00> : vector<8xf32>
    %11 = vector.multi_reduction <add>, %10, %cst_6 [1] : vector<8x256xf32> to vector<8xf32>
    %12 = vector.shape_cast %11 : vector<8xf32> to vector<8x1xf32>
    %13 = math.log %12 : vector<8x1xf32>
    %14 = vector.broadcast %13 : vector<8x1xf32> to vector<8x256xf32>
    %15 = arith.subf %9, %14 : vector<8x256xf32>
    %c0_7 = arith.constant 0 : index
    %c0_8 = arith.constant 0 : index
    %16 = vector.load %arg4[%c0_7, %c0_8] : memref<8x256xf32, #tpu.memory_space<vmem>>, vector<8x256xf32>
    tpu.vector_store %arg4[%c0_7, %c0_8], %15 {strides = array<i32>} : memref<8x256xf32, #tpu.memory_space<vmem>>, vector<8x256xf32>,
    return
  }
  func.func @transform_0(%arg0: i32) -> (i32, i32) {
    %c0_i32 = arith.constant 0 : i32
    %c0_i32_0 = arith.constant 0 : i32
    return %arg0, %c0_i32 : i32, i32
  }
  func.func @transform_1(%arg0: i32) -> (i32, i32) {
    %c0_i32 = arith.constant 0 : i32
    %c0_i32_0 = arith.constant 0 : i32
    %c0_i32_1 = arith.constant 0 : i32
    return %c0_i32, %c0_i32_0 : i32, i32
  }
  func.func @transform_2(%arg0: i32) -> (i32, i32) {
    %c0_i32 = arith.constant 0 : i32
    %c0_i32_0 = arith.constant 0 : i32
    %c0_i32_1 = arith.constant 0 : i32
    return %c0_i32, %c0_i32_0 : i32, i32
  }
  func.func @transform_3(%arg0: i32) -> (i32, i32) {
    %c0_i32 = arith.constant 0 : i32
    %c0_i32_0 = arith.constant 0 : i32
    return %arg0, %c0_i32 : i32, i32
  }
}

</mosaic_0001>

<llo_original>
// kernel: tpu_custom_call.1
$region0: #{tpu_custom_call.1}
  #allocation0 [shape = 'u32[]', space=smem, size = 0x4, offset = 0x4, fixed_abs, tag = 'smem constant byte address 0x4 - core index']
  #allocation1 [shape = 'u32[72,128]{1,0:T(1,128)}', space=vmem, size = 0x9000, scoped, tag = 'internal scratch']
  %s0 = inlined_call_operand.hbm [shape: bf16[16,32], index: 0, kind: input, shape index: {}]
  %s1 = inlined_call_operand.hbm [shape: bf16[32,256], index: 1, kind: input, shape index: {}]
  %s2 = inlined_call_operand.hbm [shape: f32[1,256], index: 2, kind: input, shape index: {}]
  %s3 = inlined_call_operand.hbm [shape: f32[16,256], index: 3, kind: output, shape index: {}]
  %s4 = sld [smem:[#allocation0]]
  $region57: #{tpu_custom_call.1} parent=0
    _
  %s6 = ssub.s32 1, %s4
  %s7 = scalar_select 0, %s6, %s4
  $region1: #{tpu_custom_call.1} parent=0
    #allocation2 [shape = 'u8[4096]{0}', space=vmem, size = 0x1000, scoped, tag = 'input window, operand 0']
    #allocation3 [shape = 's32[2]{0}', space=sflag, size = 0x8, scoped, tag = 'scoped memory for tpu_custom_call.1']
    #allocation4 [shape = 's32[2]{0}', space=sflag, size = 0x8, scoped, tag = 'scoped memory for tpu_custom_call.1']
    #allocation5 [shape = 'u8[16384]{0}', space=vmem, size = 0x4000, scoped, tag = 'input window, operand 1, single buffered']
    #allocation6 [shape = 's32[1]{0}', space=sflag, size = 0x4, scoped, tag = 'scoped memory for tpu_custom_call.1']
    #allocation7 [shape = 'u8[1024]{0}', space=vmem, size = 0x400, scoped, tag = 'input window, operand 2, single buffered']
    #allocation8 [shape = 'u8[16384]{0}', space=vmem, size = 0x4000, scoped, tag = 'output window, operand 0']
    %8 = vsyncpa [#allocation3], 0
    %s9 = scalar_lea.sflag [#allocation3], 1
    %10 = vsyncpa %s9, 0
    %11 = vsyncpa [#allocation6], 0
    %12 = vsyncpa [#allocation4], 0
    %s13 = scalar_lea.sflag [#allocation4], 1
    %14 = vsyncpa %s13, 0
    loop: start=0, step=1, limit=4
    $region2: #{tpu_custom_call.1} parent=1 // loop_pre_header
      _
    $region3: #{tpu_custom_call.1} parent=1 // loop_header
      %s16 = sphi 0, %s20
      %p17 = scmp.ge.s32.totalorder %s16, 4
      %s26 = sphi 0, %s28
      %s29 = sphi 0, %s26
      %s30 = sphi 0, %s29
      %s46 = sphi 0, %s30
      %s50 = sphi 0, %s50
      %s52 = sphi 0, %s50
      %s53 = sphi 0, %s52
      %s67 = sphi 0, %s53
      %s71 = sphi 0, %s71
      %s73 = sphi 0, %s71
      %s74 = sphi 0, %s73
      %s88 = sphi 0, %s74
      %s94 = sphi 0, %s96
      %s97 = sphi 0, %s94
      %s98 = sphi 0, %s97
      %s114 = sphi 0, %s98
    $region4: #{tpu_custom_call.1} parent=1 // loop_header_branch
      %19 = sbr.rel (%p17) target = $region8
    $region5: #{tpu_custom_call.1} parent=1 // loop_body
      %s21 = ssub.s32 %s16, 1
      %s22 = ssub.s32 %s16, 2
      %s23 = sadd.s32 %s16, 1
      %s24 = ssub.s32 %s16, %s23
      %p25 = scmp.eq.s32.totalorder %s24, 0
      %s27 = sadd.s32 %s26, 1
      %s28 = scalar_select %p25, %s26, %s27
      %p31 = pneg %p25
      %p32 = scmp.eq.s32.totalorder %s16, 1
      %p33 = por %p31, %p32
      %p34 = scmp.ne.s32.totalorder %s26, %s29
      %p35 = scmp.eq.s32.totalorder %s16, 0
      %p36 = por %p34, %p35
      %p37 = scmp.ne.s32.totalorder %s26, %s29
      %p38 = scmp.eq.s32.totalorder %s21, 1
      %p39 = por %p37, %p38
      %p40 = scmp.ne.s32.totalorder %s29, %s30
      %p41 = scmp.eq.s32.totalorder %s21, 0
      %p42 = por %p40, %p41
      %p43 = scmp.ne.s32.totalorder %s29, %s30
      %p44 = scmp.eq.s32.totalorder %s22, 1
      %p45 = por %p43, %p44
      %p47 = scmp.ne.s32.totalorder %s30, %s46
      %p48 = scmp.eq.s32.totalorder %s22, 0
      %p49 = por %p47, %p48
      %s51 = sadd.s32 %s50, 1
      %p54 = scmp.eq.s32.totalorder %s16, 1
      %p55 = scmp.ne.s32.totalorder %s50, %s52
      %p56 = scmp.eq.s32.totalorder %s16, 0
      %p57 = por %p55, %p56
      %p58 = scmp.ne.s32.totalorder %s50, %s52
      %p59 = scmp.eq.s32.totalorder %s21, 1
      %p60 = por %p58, %p59
      %p61 = scmp.ne.s32.totalorder %s52, %s53
      %p62 = scmp.eq.s32.totalorder %s21, 0
      %p63 = por %p61, %p62
      %p64 = scmp.ne.s32.totalorder %s52, %s53
      %p65 = scmp.eq.s32.totalorder %s22, 1
      %p66 = por %p64, %p65
      %p68 = scmp.ne.s32.totalorder %s53, %s67
      %p69 = scmp.eq.s32.totalorder %s22, 0
      %p70 = por %p68, %p69
      %s72 = sadd.s32 %s71, 1
      %p75 = scmp.eq.s32.totalorder %s16, 1
      %p76 = scmp.ne.s32.totalorder %s71, %s73
      %p77 = scmp.eq.s32.totalorder %s16, 0
      %p78 = por %p76, %p77
      %p79 = scmp.ne.s32.totalorder %s71, %s73
      %p80 = scmp.eq.s32.totalorder %s21, 1
      %p81 = por %p79, %p80
      %p82 = scmp.ne.s32.totalorder %s73, %s74
      %p83 = scmp.eq.s32.totalorder %s21, 0
      %p84 = por %p82, %p83
      %p85 = scmp.ne.s32.totalorder %s73, %s74
      %p86 = scmp.eq.s32.totalorder %s22, 1
      %p87 = por %p85, %p86
      %p89 = scmp.ne.s32.totalorder %s74, %s88
      %p90 = scmp.eq.s32.totalorder %s22, 0
      %p91 = por %p89, %p90
      %s92 = ssub.s32 %s16, %s23
      %p93 = scmp.eq.s32.totalorder %s92, 0
      %s95 = sadd.s32 %s94, 1
      %s96 = scalar_select %p93, %s94, %s95
      %p99 = pneg %p93
      %p100 = scmp.eq.s32.totalorder %s16, 1
      %p101 = por %p99, %p100
      %p102 = scmp.ne.s32.totalorder %s94, %s97
      %p103 = scmp.eq.s32.totalorder %s16, 0
      %p104 = por %p102, %p103
      %p105 = scmp.ne.s32.totalorder %s94, %s97
      %p106 = scmp.eq.s32.totalorder %s21, 1
      %p107 = por %p105, %p106
      %p108 = scmp.ne.s32.totalorder %s97, %s98
      %p109 = scmp.eq.s32.totalorder %s21, 0
      %p110 = por %p108, %p109
      %p111 = scmp.ne.s32.totalorder %s97, %s98
      %p112 = scmp.eq.s32.totalorder %s22, 1
      %p113 = por %p111, %p112
      %p115 = scmp.ne.s32.totalorder %s98, %s114
      %p116 = scmp.eq.s32.totalorder %s22, 0
      %p117 = por %p115, %p116
      %p118 = scmp.le.s32.totalorder 1, %s16
      %p119 = scmp.lt.s32.totalorder %s16, 3
      %p120 = pnand %p118, %p119
      %p121 = pneg %p120
      // Predicated region
      $region9: #{tpu_custom_call.1} parent=5 // pred_check
        _
      $region10: #{tpu_custom_call.1} parent=5 // pred_check_branch
        %123 = sbr.rel (%p120) target = $region12
      $region11: #{tpu_custom_call.1} parent=5 // pred_region
        %s124 = ssub.s32 %s16, 1
        // Predicated region
        $region13: #{tpu_custom_call.1} parent=11 // pred_check
          %p125 = pneg %p63
        $region14: #{tpu_custom_call.1} parent=11 // pred_check_branch
          %127 = sbr.rel (%p125) target = $region16
        $region15: #{tpu_custom_call.1} parent=11 // pred_region
          %129 = vsyncadd [#allocation6], 0
          %s130 = sshll.u32 %s1, 4
          %s131 = int_to_ptr.hbm [resolvable:$true] %s130
          %s132 = sshll.u32 [#allocation5], 4
          %s133 = int_to_ptr.vmem [resolvable:$true] %s132
          %138 = dma.hbm_to_vmem [thread:$0]  %s131, 512, %s133, [#allocation6], 128, 128, 8
        $region16: #{tpu_custom_call.1} parent=11 // pred_fallthru
          _
        // Predicated region
        $region17: #{tpu_custom_call.1} parent=11 // pred_check
          %p139 = pneg %p84
        $region18: #{tpu_custom_call.1} parent=11 // pred_check_branch
          %141 = sbr.rel (%p139) target = $region20
        $region19: #{tpu_custom_call.1} parent=11 // pred_region
          %143 = vsyncadd [#allocation6], 0
          %s145 = sshll.u32 %s2, 4
          %s146 = int_to_ptr.hbm [resolvable:$true] %s145
          %s147 = sshll.u32 [#allocation7], 4
          %s148 = int_to_ptr.vmem [resolvable:$true] %s147
          %150 = dma.hbm_to_vmem [thread:$0]  %s146, 32, %s148, [#allocation6]
        $region20: #{tpu_custom_call.1} parent=11 // pred_fallthru
          _
      $region12: #{tpu_custom_call.1} parent=5 // pred_fallthru
        _
      %p151 = scmp.lt.s32.totalorder %s16, 2
      // Predicated region
      $region21: #{tpu_custom_call.1} parent=5 // pred_check
        %p152 = pneg %p151
      $region22: #{tpu_custom_call.1} parent=5 // pred_check_branch
        %154 = sbr.rel (%p152) target = $region24
      $region23: #{tpu_custom_call.1} parent=5 // pred_region
        // Predicated region
        $region25: #{tpu_custom_call.1} parent=23 // pred_check
          %p155 = pneg %p36
        $region26: #{tpu_custom_call.1} parent=23 // pred_check_branch
          %157 = sbr.rel (%p155) target = $region28
        $region27: #{tpu_custom_call.1} parent=23 // pred_region
          %s158 = sand.u32 %s26, 1
          %s159 = scalar_lea.sflag [#allocation3], %s158
          %s160 = sand.u32 %s26, 1
          %s161 = smul.addr %s160, 4
          %s162 = scalar_lea.vmem [#allocation2], %s161
          %164 = vsyncadd %s159, 0
          %s165 = smul.addr %s16, 4
          %s166 = scalar_lea.hbm %s0, %s165
          %s168 = sshll.u32 %s166, 4
          %s169 = int_to_ptr.hbm [resolvable:$true] %s168
          %s170 = sshll.u32 %s162, 4
          %s171 = int_to_ptr.vmem [resolvable:$true] %s170
          %173 = dma.hbm_to_vmem [thread:$0]  %s169, 64, %s171, %s159
        $region28: #{tpu_custom_call.1} parent=23 // pred_fallthru
          _
      $region24: #{tpu_custom_call.1} parent=5 // pred_fallthru
        _
      %p174 = scmp.le.s32.totalorder 1, %s16
      %p175 = scmp.lt.s32.totalorder %s16, 3
      %p176 = pnand %p174, %p175
      %p177 = pneg %p176
      // Predicated region
      $region29: #{tpu_custom_call.1} parent=5 // pred_check
        _
      $region30: #{tpu_custom_call.1} parent=5 // pred_check_branch
        %179 = sbr.rel (%p176) target = $region32
      $region31: #{tpu_custom_call.1} parent=5 // pred_region
        %s180 = ssub.s32 %s16, 1
        %s181 = sand.u32 %s29, 1
        %s182 = scalar_lea.sflag [#allocation3], %s181
        %s183 = sand.u32 %s29, 1
        %s184 = smul.addr %s183, 4
        %s185 = scalar_lea.vmem [#allocation2], %s184
        // Predicated region
        $region33: #{tpu_custom_call.1} parent=31 // pred_check
          %p186 = pneg %p42
        $region34: #{tpu_custom_call.1} parent=31 // pred_check_branch
          %188 = sbr.rel (%p186) target = $region36
        $region35: #{tpu_custom_call.1} parent=31 // pred_region
          %190 = dma.done %s182, 64
        $region36: #{tpu_custom_call.1} parent=31 // pred_fallthru
          _
        // Predicated region
        $region37: #{tpu_custom_call.1} parent=31 // pred_check
          %p191 = pneg %p63
        $region38: #{tpu_custom_call.1} parent=31 // pred_check_branch
          %193 = sbr.rel (%p191) target = $region40
        $region39: #{tpu_custom_call.1} parent=31 // pred_region
          %195 = dma.done [#allocation6], 512
        $region40: #{tpu_custom_call.1} parent=31 // pred_fallthru
          _
        // Predicated region
        $region41: #{tpu_custom_call.1} parent=31 // pred_check
          %p196 = pneg %p84
        $region42: #{tpu_custom_call.1} parent=31 // pred_check_branch
          %198 = sbr.rel (%p196) target = $region44
        $region43: #{tpu_custom_call.1} parent=31 // pred_region
          %200 = dma.done [#allocation6], 32
        $region44: #{tpu_custom_call.1} parent=31 // pred_fallthru
          _
        %s201 = sand.u32 %s29, 1
        %s202 = scalar_lea.sflag [#allocation3], %s201
        %s203 = sand.u32 %s29, 1
        %s204 = smul.addr %s203, 4
        %s205 = scalar_lea.vmem [#allocation2], %s204
        %p206 = pneg %p42
        %p207 = pneg %p39
        %p208 = pneg %p63
        %p209 = pneg %p60
        %p210 = pneg %p84
        %p211 = pneg %p81
        %p212 = pneg %p110
        %p213 = pneg %p107
        %s214 = sand.u32 %s97, 1
        %s215 = scalar_lea.sflag [#allocation4], %s214
        %s216 = sand.u32 %s97, 1
        %s217 = smul.addr %s216, 16
        %s218 = scalar_lea.vmem [#allocation8], %s217
        %v220 = vld [vmem:[%s185] sm:$0xf]
        %v221 = vld [vmem:[#allocation5] sm:$0xff]
        %v222 = vld [vmem:[#allocation5 + $0x8] sm:$0xff]
        %v223 = vld [vmem:[#allocation5 + $0x10] sm:$0xff]
        %v224 = vld [vmem:[#allocation5 + $0x18] sm:$0xff]
        %v225 = vld [vmem:[#allocation7] sm:$0x3]
        %v227 = vperm.slane %v225, 0
        %v228 = vperm.slane %v225, 1
        %v235 = vunpack.c.l.b16 %v221
        %v236 = vunpack.c.h.b16 %v221
        %v237 = vunpack.c.l.b16 %v222
        %v238 = vunpack.c.h.b16 %v222
        %v239 = vunpack.c.l.b16 %v223
        %v240 = vunpack.c.h.b16 %v223
        %v241 = vunpack.c.l.b16 %v224
        %v242 = vunpack.c.h.b16 %v224
        %v243 = vpack.c.b16 %v237, %v235
        %v244 = vpack.c.b16 %v238, %v236
        %v245 = vpack.c.b16 %v241, %v239
        %v246 = vpack.c.b16 %v242, %v240
        %vm251 = vcmask 261120
        %v253 = vsel %vm251, %v220, 0
        %255 = vmatpush.bf16.msra.mxu0 0
        %256 = vmatpush.bf16.msra.mxu0 0
        %257 = vmatpush.bf16.msra.mxu0 0
        %258 = vmatpush.bf16.msra.mxu0 0
        %259 = vmatpush.bf16.msra.mxu0 0
        %260 = vmatpush.bf16.msra.mxu0 0
        %261 = vmatpush.bf16.msra.mxu0 %v245
        %262 = vmatpush.bf16.msra.mxu0 %v243
        %263 = vmatmul.bf16.gmra.mxu0 %v253
        %v264 = vpop.f32.mrf.mxu0
        %v265 = vadd.f32 %v227, %v264
        %v266 = vpop.f32.mrf.mxu0
        %267 = vdwg.mxu0
        %268 = vmatpush.bf16.msra.mxu0 0
        %269 = vmatpush.bf16.msra.mxu0 0
        %270 = vmatpush.bf16.msra.mxu0 0
        %271 = vmatpush.bf16.msra.mxu0 0
        %272 = vmatpush.bf16.msra.mxu0 0
        %273 = vmatpush.bf16.msra.mxu0 0
        %274 = vmatpush.bf16.msra.mxu0 %v246
        %275 = vmatpush.bf16.msra.mxu0 %v244
        %276 = vmatmul.bf16.gmra.mxu0 %v253
        %v277 = vpop.f32.mrf.mxu0
        %v278 = vadd.f32 %v228, %v277
        %v279 = vpop.f32.mrf.mxu0
        %280 = vdwg.mxu0
        %v281 = vmax.f32 %v265, %v278
        %282 = vmax.xlane.f32.xlu0 %v281
        %v283 = vpop.xlane.xlu0 %282
        %v284 = vsub.f32 %v265, %v283
        %v285 = vsub.f32 %v278, %v283
        %v286 = vmul.f32 %v284, 1.442695
        %v287 = vpow.pop %v286
        %v288 = vmul.f32 %v285, 1.442695
        %v289 = vpow.pop %v288
        %v290 = vadd.f32 %v287, %v289
        %291 = vadd.xlane.f32.xlu0 %v290
        %v292 = vpop.xlane.xlu0 %291
        %v293 = vlog2.pop %v292
        %v294 = vmul.f32 %v293, 0.6931472
        %v295 = vsub.f32 %v284, %v294
        %v296 = vsub.f32 %v285, %v294
        %297 = vst [vmem:[%s218] sm:$0xff] %v295
        %298 = vst [vmem:[%s218 + $0x8] sm:$0xff] %v296
        %s299 = sand.u32 %s97, 1
        %s300 = scalar_lea.sflag [#allocation4], %s299
        %s301 = sand.u32 %s97, 1
        %s302 = smul.addr %s301, 16
        %s303 = scalar_lea.vmem [#allocation8], %s302
        // Predicated region
        $region45: #{tpu_custom_call.1} parent=31 // pred_check
          %p304 = pneg %p107
        $region46: #{tpu_custom_call.1} parent=31 // pred_check_branch
          %306 = sbr.rel (%p304) target = $region48
        $region47: #{tpu_custom_call.1} parent=31 // pred_region
          %308 = vsyncadd %s300, 0
          %s309 = smul.addr %s21, 2
          %s310 = smul.addr %s309, 8
          %s311 = scalar_lea.hbm %s3, %s310
          %s313 = sshll.u32 %s303, 4
          %s314 = int_to_ptr.vmem [resolvable:$true] %s313
          %s315 = sshll.u32 %s311, 4
          %s316 = int_to_ptr.hbm [resolvable:$true] %s315
          %318 = dma.vmem_to_hbm [thread:$0]  %s314, 256, %s316, %s300
        $region48: #{tpu_custom_call.1} parent=31 // pred_fallthru
          _
      $region32: #{tpu_custom_call.1} parent=5 // pred_fallthru
        _
      %p319 = scmp.le.s32.totalorder 2, %s16
      // Predicated region
      $region49: #{tpu_custom_call.1} parent=5 // pred_check
        %p320 = pneg %p319
      $region50: #{tpu_custom_call.1} parent=5 // pred_check_branch
        %322 = sbr.rel (%p320) target = $region52
      $region51: #{tpu_custom_call.1} parent=5 // pred_region
        %s323 = ssub.s32 %s16, 2
        // Predicated region
        $region53: #{tpu_custom_call.1} parent=51 // pred_check
          %p324 = pneg %p113
        $region54: #{tpu_custom_call.1} parent=51 // pred_check_branch
          %326 = sbr.rel (%p324) target = $region56
        $region55: #{tpu_custom_call.1} parent=51 // pred_region
          %s327 = sand.u32 %s98, 1
          %s328 = scalar_lea.sflag [#allocation4], %s327
          %s329 = sand.u32 %s98, 1
          %s330 = smul.addr %s329, 16
          %s331 = scalar_lea.vmem [#allocation8], %s330
          %333 = dma.done %s328, 256
        $region56: #{tpu_custom_call.1} parent=51 // pred_fallthru
          _
      $region52: #{tpu_custom_call.1} parent=5 // pred_fallthru
        _
    $region6: #{tpu_custom_call.1} parent=1 // loop_footer
      %s20 = sadd.s32 1, %s16
    $region7: #{tpu_custom_call.1} parent=1 // loop_footer_branch
      %15 = sbr.rel target = $region3
    $region8: #{tpu_custom_call.1} parent=1 // loop_exit
      _
    %334 = vsyncpa [#allocation3], 1
    %s335 = scalar_lea.sflag [#allocation3], 1
    %336 = vsyncpa %s335, 1
    %337 = vsyncpa [#allocation6], 1
    %338 = vsyncpa [#allocation4], 1
    %s339 = scalar_lea.sflag [#allocation4], 1
    %340 = vsyncpa %s339, 1

</llo_original>
